<compile_context>
chip_gen: v7x
topology: tpu7x:2x2x1
jax: 0.10.0
libtpu: 0.0.40
codegen_flags: <defaults>
</compile_context>

<pallas_src>
import functools

import jax
import jax.numpy as jnp
from jax.experimental import pallas as pl
from jax.experimental.pallas import tpu as pltpu

BN_EPS = 1e-5
LANE = 128
DEFAULT_TILE_N = 512                   # rows / grid step (>=256 fills 256x256 MXU on v6e/v7x)
VMEM_LIMIT_BYTES = 48 * 1024 * 1024    # leaves headroom inside v7x's 64 MiB physical VMEM


def _round_up(x, m):
    return ((x + m - 1) // m) * m


def _cparams(*sem):
    return pltpu.CompilerParams(dimension_semantics=sem,
                                vmem_limit_bytes=VMEM_LIMIT_BYTES)


# ---------------------------------------------------------------------------
# Kernels
# ---------------------------------------------------------------------------
def _linear_kernel(x_ref, w_ref, p_ref, o_ref, *, bias_row):
    """Row-tiled Linear: o = x @ w + b.  w and the param slab are resident,
    x / o stream with the ("parallel") row grid.  bf16 cast is in-kernel."""
    x = x_ref[...].astype(jnp.bfloat16)
    y = jnp.dot(x, w_ref[...], preferred_element_type=jnp.float32)
    o_ref[...] = (y + p_ref[bias_row:bias_row + 1, :]).astype(o_ref.dtype)


def _linear_stats_kernel(x_ref, w_ref, p_ref, y_ref, stats_ref, *, bias_row):
    """Visual pass 1: Linear + global per-channel sum / sum-of-squares.
    stats_ref is a resident accumulator (same output block every step), hence
    the "arbitrary" row axis.  Stats are taken on the PRE-bias product z so the
    zero row-padding contributes exactly zero; variance is shift-invariant and
    the bias shift of the mean is re-applied in the normalize pass."""
    @pl.when(pl.program_id(0) == 0)
    def _():
        stats_ref[...] = jnp.zeros_like(stats_ref)

    z = jnp.dot(x_ref[...].astype(jnp.bfloat16), w_ref[...],
                preferred_element_type=jnp.float32)            # (tile_n, Dpad) f32
    y_ref[...] = (z + p_ref[bias_row:bias_row + 1, :]).astype(y_ref.dtype)
    stats_ref[0:1, :] += jnp.sum(z, axis=0, keepdims=True)
    stats_ref[1:2, :] += jnp.sum(z * z, axis=0, keepdims=True)


def _bn_relu_kernel(y_ref, stats_ref, p_ref, o_ref, *, inv_n, bias_row):
    """Visual pass 2: streaming BatchNorm (batch stats) + ReLU, "parallel" rows.
    out = (y - mean_y) * gamma * rsqrt(var + eps) + beta, with
    mean_y = mean_z + bias and var = E[z^2] - E[z]^2 (clamped at 0)."""
    mean_z = stats_ref[0:1, :] * inv_n
    var = jnp.maximum(stats_ref[1:2, :] * inv_n - mean_z * mean_z, 0.0)
    inv_std = jax.lax.rsqrt(var + BN_EPS)
    gamma = p_ref[2:3, :]
    beta = p_ref[3:4, :]
    bias = p_ref[bias_row:bias_row + 1, :]
    scale = gamma * inv_std                       # 0 on padded channels (gamma pad == 0)
    shift = beta - (mean_z + bias) * scale
    o_ref[...] = jnp.maximum(y_ref[...] * scale + shift, 0.0).astype(o_ref.dtype)


# ---------------------------------------------------------------------------
# One-time parameter prep (hoisted out of the hot path)
# ---------------------------------------------------------------------------
def prepare_params(params):
    """Column-pad weights to a lane-dense multiple of 128, cast to bf16, and
    pack per-channel vectors into one (8, Dpad) f32 slab:
      row 0 = b_text, row 1 = b_vis, row 2 = bn_gamma, row 3 = bn_beta.
    Padded channels keep gamma/beta == 0 so padded output lanes stay zero."""
    dout = params["w_text"].shape[1]
    dpad = _round_up(dout, LANE)

    def pad_cols(a):
        return jnp.pad(a, ((0, 0), (0, dpad - dout)))

    wt = pad_cols(params["w_text"].astype(jnp.float32)).astype(jnp.bfloat16)
    wv = pad_cols(params["w_vis"].astype(jnp.float32)).astype(jnp.bfloat16)
    p = jnp.zeros((8, dpad), jnp.float32)
    p = p.at[0, :dout].set(params["b_text"])
    p = p.at[1, :dout].set(params["b_vis"])
    p = p.at[2, :dout].set(params["bn_gamma"])
    p = p.at[3, :dout].set(params["bn_beta"])
    return {"w_text": wt, "w_vis": wv, "pslab": p}


# ---------------------------------------------------------------------------
# Hot-path forward
# ---------------------------------------------------------------------------
@functools.partial(jax.jit, static_argnames=("common_dim", "tile_n", "out_dtype"))
def text_visual_feature_mapper(text_features, visual_features, prep, *,
                               common_dim, tile_n=DEFAULT_TILE_N,
                               out_dtype=jnp.bfloat16):
    assert tile_n % 8 == 0
    wt, wv, pslab = prep["w_text"], prep["w_vis"], prep["pslab"]
    dpad = wt.shape[1]

    B, Tt, Dt = text_features.shape
    Bv, Tv, Dv = visual_features.shape
    nt, nv = B * Tt, Bv * Tv

    def row_tiling(n):
        tn = min(tile_n, _round_up(n, 8))
        return tn, _round_up(n, tn)

    tn_t, nt_pad = row_tiling(nt)
    tn_v, nv_pad = row_tiling(nv)

    xt = text_features.reshape(nt, Dt)
    xv = visual_features.reshape(nv, Dv)
    if nt_pad != nt:
        xt = jnp.pad(xt, ((0, nt_pad - nt), (0, 0)))
    if nv_pad != nv:
        xv = jnp.pad(xv, ((0, nv_pad - nv), (0, 0)))   # zero rows: exact no-op for BN stats

    resident = pl.BlockSpec((8, dpad), lambda i: (0, 0))

    # ---- text path: row-tiled Linear --------------------------------------
    ot = pl.pallas_call(
        functools.partial(_linear_kernel, bias_row=0),
        out_shape=jax.ShapeDtypeStruct((nt_pad, dpad), out_dtype),
        grid=(nt_pad // tn_t,),
        in_specs=[pl.BlockSpec((tn_t, Dt), lambda i: (i, 0)),
                  pl.BlockSpec((Dt, dpad), lambda i: (0, 0)),
                  resident],
        out_specs=pl.BlockSpec((tn_t, dpad), lambda i: (i, 0)),
        compiler_params=_cparams("parallel"),
    )(xt, wt, pslab)

    # ---- visual path, pass 1: Linear + global sum / sumsq -----------------
    # TODO(synk): y could be stored bf16 (or aliased into the final output via
    # input_output_aliases) to halve the intermediate HBM traffic.
    yv, stats = pl.pallas_call(
        functools.partial(_linear_stats_kernel, bias_row=1),
        out_shape=(jax.ShapeDtypeStruct((nv_pad, dpad), jnp.float32),
                   jax.ShapeDtypeStruct((8, dpad), jnp.float32)),
        grid=(nv_pad // tn_v,),
        in_specs=[pl.BlockSpec((tn_v, Dv), lambda i: (i, 0)),
                  pl.BlockSpec((Dv, dpad), lambda i: (0, 0)),
                  resident],
        out_specs=(pl.BlockSpec((tn_v, dpad), lambda i: (i, 0)),
                   pl.BlockSpec((8, dpad), lambda i: (0, 0))),
        compiler_params=_cparams("arbitrary"),
    )(xv, wv, pslab)

    # ---- visual path, pass 2: streaming BatchNorm + ReLU -------------------
    ov = pl.pallas_call(
        functools.partial(_bn_relu_kernel, inv_n=1.0 / nv, bias_row=1),
        out_shape=jax.ShapeDtypeStruct((nv_pad, dpad), out_dtype),
        grid=(nv_pad // tn_v,),
        in_specs=[pl.BlockSpec((tn_v, dpad), lambda i: (i, 0)),
                  resident, resident],
        out_specs=pl.BlockSpec((tn_v, dpad), lambda i: (i, 0)),
        compiler_params=_cparams("parallel"),
    )(yv, stats, pslab)

    # Slice off row/lane padding only when it exists (no-op at aligned
    # production dims, per review).
    if nt_pad != nt or dpad != common_dim:
        ot = ot[:nt, :common_dim]
    if nv_pad != nv or dpad != common_dim:
        ov = ov[:nv, :common_dim]
    return ot.reshape(B, Tt, common_dim), ov.reshape(Bv, Tv, common_dim)


# ---------------------------------------------------------------------------
# Pure-JAX reference (same bf16 matmul operand precision)
# ---------------------------------------------------------------------------
def _reference(text_features, visual_features, p):
    B, Tt, Dt = text_features.shape
    Bv, Tv, Dv = visual_features.shape
    C = p["w_text"].shape[1]

    xt = text_features.reshape(-1, Dt).astype(jnp.bfloat16)
    mt = jnp.dot(xt, p["w_text"].astype(jnp.bfloat16),
                 preferred_element_type=jnp.float32) + p["b_text"]
    mt = mt.reshape(B, Tt, C)

    xv = visual_features.reshape(-1, Dv).astype(jnp.bfloat16)
    y = jnp.dot(xv, p["w_vis"].astype(jnp.bfloat16),
                preferred_element_type=jnp.float32) + p["b_vis"]
    mean = y.mean(0)
    var = ((y - mean) ** 2).mean(0)                       # biased, training-mode BN
    yhat = (y - mean) / jnp.sqrt(var + BN_EPS)
    mv = jnp.maximum(yhat * p["bn_gamma"] + p["bn_beta"], 0.0).reshape(Bv, Tv, C)
    return mt, mv


# ---------------------------------------------------------------------------
# Main
# ---------------------------------------------------------------------------
if __name__ == "__main__":
    key = jax.random.PRNGKey(0)
    ks = jax.random.split(key, 8)

    B = 2
    T_TEXT, T_VIS = 8, 16
    TEXT_DIM, VISUAL_DIM, COMMON_DIM = 32, 48, 64

    def uinit(k, shape, fan_in):
        bound = 1.0 / (fan_in ** 0.5)
        return jax.random.uniform(k, shape, jnp.float32, -bound, bound)

    params = {
        "w_text": uinit(ks[0], (TEXT_DIM, COMMON_DIM), TEXT_DIM),
        "b_text": uinit(ks[1], (COMMON_DIM,), TEXT_DIM),
        "w_vis": uinit(ks[2], (VISUAL_DIM, COMMON_DIM), VISUAL_DIM),
        "b_vis": uinit(ks[3], (COMMON_DIM,), VISUAL_DIM),
        # BatchNorm1d affine params (PyTorch default: gamma=1, beta=0).
        "bn_gamma": jnp.ones((COMMON_DIM,), jnp.float32),
        "bn_beta": jnp.zeros((COMMON_DIM,), jnp.float32),
    }

    text_features = jax.random.normal(ks[4], (B, T_TEXT, TEXT_DIM), jnp.float32)
    visual_features = jax.random.normal(ks[5], (B, T_VIS, VISUAL_DIM), jnp.float32)

    # One-time parameter prep, outside the hot path.
    prep = prepare_params(params)
    jax.block_until_ready(prep)

    mapped_text, mapped_visual = text_visual_feature_mapper(
        text_features, visual_features, prep, common_dim=COMMON_DIM)
    jax.block_until_ready((mapped_text, mapped_visual))

    ref_text, ref_visual = _reference(text_features, visual_features, params)
    assert mapped_text.shape == (B, T_TEXT, COMMON_DIM)
    assert mapped_visual.shape == (B, T_VIS, COMMON_DIM)
    # bf16 output stores + bf16 MXU operands -> compare with bf16-scale tolerance.
    assert jnp.allclose(mapped_text.astype(jnp.float32), ref_text, atol=3e-2, rtol=3e-2)
    assert jnp.allclose(mapped_visual.astype(jnp.float32), ref_visual, atol=3e-2, rtol=3e-2)

    print("KERNEL_OK")
</pallas_src>

<mosaic_0001>
module attributes {stable_mosaic.version = 11 : i64} {
  func.func @_bn_relu_kernel(%arg0: i32, %arg1: memref<32x128xf32, #tpu.memory_space<vmem>>, %arg2: memref<8x128xf32, #tpu.memory_space<vmem>>, %arg3: memref<8x128xf32, #tpu.memory_space<vmem>>, %arg4: memref<32x128xbf16, #tpu.memory_space<vmem>>) attributes {dimension_semantics = [#tpu.dimension_semantics<parallel>], iteration_bounds = array<i64: 1>, scalar_prefetch = 0 : i64, scratch_operands = 0 : i64, tpu.core_type = #tpu.core_type<tc>, window_params = [{transform_indices = @transform_0, window_bounds = array<i64: 32, 128>}, {pipeline_mode = #tpu.pipeline_mode<synchronous>, transform_indices = @transform_1, window_bounds = array<i64: 8, 128>}, {pipeline_mode = #tpu.pipeline_mode<synchronous>, transform_indices = @transform_2, window_bounds = array<i64: 8, 128>}, {transform_indices = @transform_3, window_bounds = array<i64: 32, 128>}]} {
    %c0 = arith.constant 0 : index
    %c0_0 = arith.constant 0 : index
    %0 = vector.load %arg2[%c0, %c0_0] : memref<8x128xf32, #tpu.memory_space<vmem>>, vector<1x128xf32>
    %cst = arith.constant 3.125000e-02 : f32
    %1 = vector.broadcast %cst : f32 to vector<1x128xf32>
    %2 = arith.mulf %0, %1 : vector<1x128xf32>
    %c1 = arith.constant 1 : index
    %c0_1 = arith.constant 0 : index
    %3 = vector.load %arg2[%c1, %c0_1] : memref<8x128xf32, #tpu.memory_space<vmem>>, vector<1x128xf32>
    %cst_2 = arith.constant 3.125000e-02 : f32
    %4 = vector.broadcast %cst_2 : f32 to vector<1x128xf32>
    %5 = arith.mulf %3, %4 : vector<1x128xf32>
    %6 = arith.mulf %2, %2 : vector<1x128xf32>
    %7 = arith.subf %5, %6 : vector<1x128xf32>
    %cst_3 = arith.constant 0.000000e+00 : f32
    %8 = vector.broadcast %cst_3 : f32 to vector<1x128xf32>
    %9 = arith.maximumf %7, %8 : vector<1x128xf32>
    %cst_4 = arith.constant 9.99999974E-6 : f32
    %10 = vector.broadcast %cst_4 : f32 to vector<1x128xf32>
    %11 = arith.addf %9, %10 : vector<1x128xf32>
    %12 = math.rsqrt %11 : vector<1x128xf32>
    %c2 = arith.constant 2 : index
    %c0_5 = arith.constant 0 : index
    %13 = vector.load %arg3[%c2, %c0_5] : memref<8x128xf32, #tpu.memory_space<vmem>>, vector<1x128xf32>
    %c3 = arith.constant 3 : index
    %c0_6 = arith.constant 0 : index
    %14 = vector.load %arg3[%c3, %c0_6] : memref<8x128xf32, #tpu.memory_space<vmem>>, vector<1x128xf32>
    %c1_7 = arith.constant 1 : index
    %c0_8 = arith.constant 0 : index
    %15 = vector.load %arg3[%c1_7, %c0_8] : memref<8x128xf32, #tpu.memory_space<vmem>>, vector<1x128xf32>
    %16 = arith.mulf %13, %12 : vector<1x128xf32>
    %17 = arith.addf %2, %15 : vector<1x128xf32>
    %18 = arith.mulf %17, %16 : vector<1x128xf32>
    %19 = arith.subf %14, %18 : vector<1x128xf32>
    %c0_9 = arith.constant 0 : index
    %c0_10 = arith.constant 0 : index
    %20 = vector.load %arg1[%c0_9, %c0_10] : memref<32x128xf32, #tpu.memory_space<vmem>>, vector<32x128xf32>
    %21 = vector.broadcast %16 : vector<1x128xf32> to vector<32x128xf32>
    %22 = arith.mulf %20, %21 : vector<32x128xf32>
    %23 = vector.broadcast %19 : vector<1x128xf32> to vector<32x128xf32>
    %24 = arith.addf %22, %23 : vector<32x128xf32>
    %cst_11 = arith.constant 0.000000e+00 : f32
    %25 = vector.broadcast %cst_11 : f32 to vector<32x128xf32>
    %26 = arith.maximumf %24, %25 : vector<32x128xf32>
    %27 = arith.truncf %26 : vector<32x128xf32> to vector<32x128xbf16>
    %c0_12 = arith.constant 0 : index
    %c0_13 = arith.constant 0 : index
    %28 = vector.load %arg4[%c0_12, %c0_13] : memref<32x128xbf16, #tpu.memory_space<vmem>>, vector<32x128xbf16>
    tpu.vector_store %arg4[%c0_12, %c0_13], %27 {strides = array<i32>} : memref<32x128xbf16, #tpu.memory_space<vmem>>, vector<32x128xbf16>,
    return
  }
  func.func @transform_0(%arg0: i32) -> (i32, i32) {
    %c0_i32 = arith.constant 0 : i32
    %c0_i32_0 = arith.constant 0 : i32
    return %arg0, %c0_i32 : i32, i32
  }
  func.func @transform_1(%arg0: i32) -> (i32, i32) {
    %c0_i32 = arith.constant 0 : i32
    %c0_i32_0 = arith.constant 0 : i32
    %c0_i32_1 = arith.constant 0 : i32
    return %c0_i32, %c0_i32_0 : i32, i32
  }
  func.func @transform_2(%arg0: i32) -> (i32, i32) {
    %c0_i32 = arith.constant 0 : i32
    %c0_i32_0 = arith.constant 0 : i32
    %c0_i32_1 = arith.constant 0 : i32
    return %c0_i32, %c0_i32_0 : i32, i32
  }
  func.func @transform_3(%arg0: i32) -> (i32, i32) {
    %c0_i32 = arith.constant 0 : i32
    %c0_i32_0 = arith.constant 0 : i32
    return %arg0, %c0_i32 : i32, i32
  }
}

module attributes {stable_mosaic.version = 11 : i64} {
  func.func @_linear_stats_kernel(%arg0: i32, %arg1: memref<32x48xf32, #tpu.memory_space<vmem>>, %arg2: memref<48x128xbf16, #tpu.memory_space<vmem>>, %arg3: memref<8x128xf32, #tpu.memory_space<vmem>>, %arg4: memref<32x128xf32, #tpu.memory_space<vmem>>, %arg5: memref<8x128xf32, #tpu.memory_space<vmem>>) attributes {dimension_semantics = [#tpu.dimension_semantics<arbitrary>], iteration_bounds = array<i64: 1>, scalar_prefetch = 0 : i64, scratch_operands = 0 : i64, tpu.core_type = #tpu.core_type<tc>, window_params = [{transform_indices = @transform_0, window_bounds = array<i64: 32, 48>}, {pipeline_mode = #tpu.pipeline_mode<synchronous>, transform_indices = @transform_1, window_bounds = array<i64: 48, 128>}, {pipeline_mode = #tpu.pipeline_mode<synchronous>, transform_indices = @transform_2, window_bounds = array<i64: 8, 128>}, {transform_indices = @transform_3, window_bounds = array<i64: 32, 128>}, {pipeline_mode = #tpu.pipeline_mode<synchronous>, transform_indices = @transform_4, window_bounds = array<i64: 8, 128>}]} {
    %c0_i32 = arith.constant 0 : i32
    %0 = arith.cmpi eq, %arg0, %c0_i32 : i32
    %1 = arith.extui %0 : i1 to i32
    %c0_i32_0 = arith.constant 0 : i32
    %2 = arith.cmpi ne, %1, %c0_i32_0 : i32
    scf.if %2 {
      %cst_17 = arith.constant 0.000000e+00 : f32
      %22 = vector.broadcast %cst_17 : f32 to vector<8x128xf32>
      %c0_18 = arith.constant 0 : index
      %c0_19 = arith.constant 0 : index
      %23 = vector.load %arg5[%c0_18, %c0_19] : memref<8x128xf32, #tpu.memory_space<vmem>>, vector<8x128xf32>
      tpu.vector_store %arg5[%c0_18, %c0_19], %22 {strides = array<i32>} : memref<8x128xf32, #tpu.memory_space<vmem>>, vector<8x128xf32>,
    } else {
    }
    %c0 = arith.constant 0 : index
    %c0_1 = arith.constant 0 : index
    %3 = vector.load %arg1[%c0, %c0_1] : memref<32x48xf32, #tpu.memory_space<vmem>>, vector<32x48xf32>
    %4 = arith.truncf %3 : vector<32x48xf32> to vector<32x48xbf16>
    %c0_2 = arith.constant 0 : index
    %c0_3 = arith.constant 0 : index
    %5 = vector.load %arg2[%c0_2, %c0_3] : memref<48x128xbf16, #tpu.memory_space<vmem>>, vector<48x128xbf16>
    %cst = arith.constant dense<0.000000e+00> : vector<32x128xf32>
    %6 = tpu.matmul %4, %5, %cst {dimension_numbers = #tpu.dot_dimension_numbers<[1], [0], [0], [1], [0, 0, 1, 1], [], []>} : vector<32x48xbf16>, vector<48x128xbf16>, vector<32x128xf32> -> vector<32x128xf32>
    %c1 = arith.constant 1 : index
    %c0_4 = arith.constant 0 : index
    %7 = vector.load %arg3[%c1, %c0_4] : memref<8x128xf32, #tpu.memory_space<vmem>>, vector<1x128xf32>
    %8 = vector.broadcast %7 : vector<1x128xf32> to vector<32x128xf32>
    %9 = arith.addf %6, %8 : vector<32x128xf32>
    %c0_5 = arith.constant 0 : index
    %c0_6 = arith.constant 0 : index
    %10 = vector.load %arg4[%c0_5, %c0_6] : memref<32x128xf32, #tpu.memory_space<vmem>>, vector<32x128xf32>
    tpu.vector_store %arg4[%c0_5, %c0_6], %9 {strides = array<i32>} : memref<32x128xf32, #tpu.memory_space<vmem>>, vector<32x128xf32>,
    %c0_7 = arith.constant 0 : index
    %c0_8 = arith.constant 0 : index
    %11 = vector.load %arg5[%c0_7, %c0_8] : memref<8x128xf32, #tpu.memory_space<vmem>>, vector<1x128xf32>
    %cst_9 = arith.constant dense<0.000000e+00> : vector<128xf32>
    %12 = vector.multi_reduction <add>, %6, %cst_9 [0] : vector<32x128xf32> to vector<128xf32>
    %13 = vector.shape_cast %12 : vector<128xf32> to vector<1x128xf32>
    %14 = arith.addf %11, %13 : vector<1x128xf32>
    %c0_10 = arith.constant 0 : index
    %c0_11 = arith.constant 0 : index
    %15 = vector.load %arg5[%c0_10, %c0_11] : memref<8x128xf32, #tpu.memory_space<vmem>>, vector<1x128xf32>
    tpu.vector_store %arg5[%c0_10, %c0_11], %14 {strides = array<i32>} : memref<8x128xf32, #tpu.memory_space<vmem>>, vector<1x128xf32>,
    %c1_12 = arith.constant 1 : index
    %c0_13 = arith.constant 0 : index
    %16 = vector.load %arg5[%c1_12, %c0_13] : memref<8x128xf32, #tpu.memory_space<vmem>>, vector<1x128xf32>
    %17 = arith.mulf %6, %6 : vector<32x128xf32>
    %cst_14 = arith.constant dense<0.000000e+00> : vector<128xf32>
    %18 = vector.multi_reduction <add>, %17, %cst_14 [0] : vector<32x128xf32> to vector<128xf32>
    %19 = vector.shape_cast %18 : vector<128xf32> to vector<1x128xf32>
    %20 = arith.addf %16, %19 : vector<1x128xf32>
    %c1_15 = arith.constant 1 : index
    %c0_16 = arith.constant 0 : index
    %21 = vector.load %arg5[%c1_15, %c0_16] : memref<8x128xf32, #tpu.memory_space<vmem>>, vector<1x128xf32>
    tpu.vector_store %arg5[%c1_15, %c0_16], %20 {strides = array<i32>} : memref<8x128xf32, #tpu.memory_space<vmem>>, vector<1x128xf32>,
    return
  }
  func.func @transform_0(%arg0: i32) -> (i32, i32) {
    %c0_i32 = arith.constant 0 : i32
    %c0_i32_0 = arith.constant 0 : i32
    return %arg0, %c0_i32 : i32, i32
  }
  func.func @transform_1(%arg0: i32) -> (i32, i32) {
    %c0_i32 = arith.constant 0 : i32
    %c0_i32_0 = arith.constant 0 : i32
    %c0_i32_1 = arith.constant 0 : i32
    return %c0_i32, %c0_i32_0 : i32, i32
  }
  func.func @transform_2(%arg0: i32) -> (i32, i32) {
    %c0_i32 = arith.constant 0 : i32
    %c0_i32_0 = arith.constant 0 : i32
    %c0_i32_1 = arith.constant 0 : i32
    return %c0_i32, %c0_i32_0 : i32, i32
  }
  func.func @transform_3(%arg0: i32) -> (i32, i32) {
    %c0_i32 = arith.constant 0 : i32
    %c0_i32_0 = arith.constant 0 : i32
    return %arg0, %c0_i32 : i32, i32
  }
  func.func @transform_4(%arg0: i32) -> (i32, i32) {
    %c0_i32 = arith.constant 0 : i32
    %c0_i32_0 = arith.constant 0 : i32
    %c0_i32_1 = arith.constant 0 : i32
    return %c0_i32, %c0_i32_0 : i32, i32
  }
}

module attributes {stable_mosaic.version = 11 : i64} {
  func.func @_linear_kernel(%arg0: i32, %arg1: memref<16x32xf32, #tpu.memory_space<vmem>>, %arg2: memref<32x128xbf16, #tpu.memory_space<vmem>>, %arg3: memref<8x128xf32, #tpu.memory_space<vmem>>, %arg4: memref<16x128xbf16, #tpu.memory_space<vmem>>) attributes {dimension_semantics = [#tpu.dimension_semantics<parallel>], iteration_bounds = array<i64: 1>, scalar_prefetch = 0 : i64, scratch_operands = 0 : i64, tpu.core_type = #tpu.core_type<tc>, window_params = [{transform_indices = @transform_0, window_bounds = array<i64: 16, 32>}, {pipeline_mode = #tpu.pipeline_mode<synchronous>, transform_indices = @transform_1, window_bounds = array<i64: 32, 128>}, {pipeline_mode = #tpu.pipeline_mode<synchronous>, transform_indices = @transform_2, window_bounds = array<i64: 8, 128>}, {transform_indices = @transform_3, window_bounds = array<i64: 16, 128>}]} {
    %c0 = arith.constant 0 : index
    %c0_0 = arith.constant 0 : index
    %0 = vector.load %arg1[%c0, %c0_0] : memref<16x32xf32, #tpu.memory_space<vmem>>, vector<16x32xf32>
    %1 = arith.truncf %0 : vector<16x32xf32> to vector<16x32xbf16>
    %c0_1 = arith.constant 0 : index
    %c0_2 = arith.constant 0 : index
    %2 = vector.load %arg2[%c0_1, %c0_2] : memref<32x128xbf16, #tpu.memory_space<vmem>>, vector<32x128xbf16>
    %cst = arith.constant dense<0.000000e+00> : vector<16x128xf32>
    %3 = tpu.matmul %1, %2, %cst {dimension_numbers = #tpu.dot_dimension_numbers<[1], [0], [0], [1], [0, 0, 1, 1], [], []>} : vector<16x32xbf16>, vector<32x128xbf16>, vector<16x128xf32> -> vector<16x128xf32>
    %c0_3 = arith.constant 0 : index
    %c0_4 = arith.constant 0 : index
    %4 = vector.load %arg3[%c0_3, %c0_4] : memref<8x128xf32, #tpu.memory_space<vmem>>, vector<1x128xf32>
    %5 = vector.broadcast %4 : vector<1x128xf32> to vector<16x128xf32>
    %6 = arith.addf %3, %5 : vector<16x128xf32>
    %7 = arith.truncf %6 : vector<16x128xf32> to vector<16x128xbf16>
    %c0_5 = arith.constant 0 : index
    %c0_6 = arith.constant 0 : index
    %8 = vector.load %arg4[%c0_5, %c0_6] : memref<16x128xbf16, #tpu.memory_space<vmem>>, vector<16x128xbf16>
    tpu.vector_store %arg4[%c0_5, %c0_6], %7 {strides = array<i32>} : memref<16x128xbf16, #tpu.memory_space<vmem>>, vector<16x128xbf16>,
    return
  }
  func.func @transform_0(%arg0: i32) -> (i32, i32) {
    %c0_i32 = arith.constant 0 : i32
    %c0_i32_0 = arith.constant 0 : i32
    return %arg0, %c0_i32 : i32, i32
  }
  func.func @transform_1(%arg0: i32) -> (i32, i32) {
    %c0_i32 = arith.constant 0 : i32
    %c0_i32_0 = arith.constant 0 : i32
    %c0_i32_1 = arith.constant 0 : i32
    return %c0_i32, %c0_i32_0 : i32, i32
  }
  func.func @transform_2(%arg0: i32) -> (i32, i32) {
    %c0_i32 = arith.constant 0 : i32
    %c0_i32_0 = arith.constant 0 : i32
    %c0_i32_1 = arith.constant 0 : i32
    return %c0_i32, %c0_i32_0 : i32, i32
  }
  func.func @transform_3(%arg0: i32) -> (i32, i32) {
    %c0_i32 = arith.constant 0 : i32
    %c0_i32_0 = arith.constant 0 : i32
    return %arg0, %c0_i32 : i32, i32
  }
}

</mosaic_0001>

<llo_original>
// kernel: text_visual_feature_mapper.4
$region0: #{text_visual_feature_mapper.4}
  #allocation0 [shape = 'u32[]', space=smem, size = 0x4, offset = 0x4, fixed_abs, tag = 'smem constant byte address 0x4 - core index']
  #allocation1 [shape = 'u32[144,128]{1,0:T(1,128)}', space=vmem, size = 0x12000, scoped, tag = 'internal scratch']
  %s0 = inlined_call_operand.hbm [shape: f32[32,48], index: 0, kind: input, shape index: {}]
  %s1 = inlined_call_operand.hbm [shape: bf16[48,128], index: 1, kind: input, shape index: {}]
  %s2 = inlined_call_operand.vmem [shape: f32[8,128], index: 2, kind: input, shape index: {}]
  %s3 = inlined_call_operand.vmem [shape: f32[32,128], index: 3, kind: output, shape index: {0}]
  %s4 = inlined_call_operand.vmem [shape: f32[8,128], index: 4, kind: output, shape index: {1}]
  %5 = xla_tuple %s3, %s4
  %s6 = sld [smem:[#allocation0]]
  $region42: #{text_visual_feature_mapper.4} parent=0
    _
  %s8 = ssub.s32 1, %s6
  %s9 = scalar_select 0, %s8, %s6
  $region1: #{text_visual_feature_mapper.4} parent=0
    #allocation2 [shape = 'u8[16384]{0}', space=vmem, size = 0x4000, scoped, tag = 'input window, operand 0, single buffered']
    #allocation3 [shape = 's32[1]{0}', space=sflag, size = 0x4, scoped, tag = 'scoped memory for text_visual_feature_mapper.4']
    #allocation4 [shape = 'u8[12288]{0}', space=vmem, size = 0x3000, scoped, tag = 'input window, operand 1, single buffered']
    #allocation5 [shape = 's32[1]{0}', space=sflag, size = 0x4, scoped, tag = 'scoped memory for text_visual_feature_mapper.4']
    %10 = vsyncpa [#allocation3], 0
    %11 = vsyncpa [#allocation5], 0
    // Predicated region
    $region2: #{text_visual_feature_mapper.4} parent=1 // pred_check
      _
    $region3: #{text_visual_feature_mapper.4} parent=1 // pred_check_branch
      %13 = sbr.rel (0) target = $region5
    $region4: #{text_visual_feature_mapper.4} parent=1 // pred_region
      %s15 = ssub.s32 512, 512
      %16 = vsyncadd [#allocation3], %s15
      %s17 = sshll.u32 [#allocation2], 4
      %s18 = int_to_ptr.vmem [resolvable:$true] %s17
      %23 = dma.hbm_to_vmem [thread:$0]  %s0, 512, %s18, [#allocation3], 128, 128, 8
    $region5: #{text_visual_feature_mapper.4} parent=1 // pred_fallthru
      _
    // Predicated region
    $region6: #{text_visual_feature_mapper.4} parent=1 // pred_check
      _
    $region7: #{text_visual_feature_mapper.4} parent=1 // pred_check_branch
      %25 = sbr.rel (0) target = $region9
    $region8: #{text_visual_feature_mapper.4} parent=1 // pred_region
      %s27 = ssub.s32 384, 384
      %28 = vsyncadd [#allocation5], %s27
      %s29 = sshll.u32 [#allocation4], 4
      %s30 = int_to_ptr.vmem [resolvable:$true] %s29
      %35 = dma.hbm_to_vmem [thread:$0]  %s1, 384, %s30, [#allocation5], 64, 64, 4
    $region9: #{text_visual_feature_mapper.4} parent=1 // pred_fallthru
      _
    // Predicated region
    $region10: #{text_visual_feature_mapper.4} parent=1 // pred_check
      _
    $region11: #{text_visual_feature_mapper.4} parent=1 // pred_check_branch
      %37 = sbr.rel (0) target = $region13
    $region12: #{text_visual_feature_mapper.4} parent=1 // pred_region
      _
    $region13: #{text_visual_feature_mapper.4} parent=1 // pred_fallthru
      _
    // Predicated region
    $region14: #{text_visual_feature_mapper.4} parent=1 // pred_check
      _
    $region15: #{text_visual_feature_mapper.4} parent=1 // pred_check_branch
      %39 = sbr.rel (0) target = $region17
    $region16: #{text_visual_feature_mapper.4} parent=1 // pred_region
      %40 = dma.done [#allocation3], 512
    $region17: #{text_visual_feature_mapper.4} parent=1 // pred_fallthru
      _
    // Predicated region
    $region18: #{text_visual_feature_mapper.4} parent=1 // pred_check
      _
    $region19: #{text_visual_feature_mapper.4} parent=1 // pred_check_branch
      %42 = sbr.rel (0) target = $region21
    $region20: #{text_visual_feature_mapper.4} parent=1 // pred_region
      %43 = dma.done [#allocation5], 384
    $region21: #{text_visual_feature_mapper.4} parent=1 // pred_fallthru
      _
    %p45 = scmp.eq.s32.totalorder 0, 0
    // Predicated region
    $region22: #{text_visual_feature_mapper.4} parent=1 // pred_check
      %p46 = pneg %p45
    $region23: #{text_visual_feature_mapper.4} parent=1 // pred_check_branch
      %48 = sbr.rel (%p46) target = $region25
    $region24: #{text_visual_feature_mapper.4} parent=1 // pred_region
      %49 = vst [vmem:[%s4] sm:$0xff] 0.0
    $region25: #{text_visual_feature_mapper.4} parent=1 // pred_fallthru
      _
    %v50 = vld [vmem:[#allocation2] sm:$0xff]
    %v51 = vld [vmem:[#allocation2 + $0x8] sm:$0xff]
    %v52 = vld [vmem:[#allocation2 + $0x10] sm:$0xff]
    %v53 = vld [vmem:[#allocation2 + $0x18] sm:$0xff]
    %v54 = vpack.c.bf16 %v51, %v50
    %v55 = vpack.c.bf16 %v53, %v52
    %v56 = vld [vmem:[#allocation4] sm:$0xf]
    %v57 = vld [vmem:[#allocation4 + $0x4] sm:$0xf]
    %v58 = vld [vmem:[#allocation4 + $0x8] sm:$0xf]
    %v59 = vld [vmem:[#allocation4 + $0xc] sm:$0xf]
    %v60 = vld [vmem:[#allocation4 + $0x10] sm:$0xf]
    %v61 = vld [vmem:[#allocation4 + $0x14] sm:$0xf]
    %v68 = vunpack.c.l.b16 %v56
    %v69 = vunpack.c.l.b16 %v57
    %v70 = vunpack.c.l.b16 %v58
    %v71 = vunpack.c.l.b16 %v59
    %v72 = vunpack.c.l.b16 %v60
    %v73 = vunpack.c.l.b16 %v61
    %v74 = vpack.c.b16 %v69, %v68
    %v75 = vpack.c.b16 %v71, %v70
    %v76 = vpack.c.b16 %v73, %v72
    %vm80 = vcmask 392192
    %v82 = vsel %vm80, %v54, 0
    %v85 = vsel %vm80, %v55, 0
    %87 = vmatprep.subr.bf16.mxu0 0
    %88 = vmatpush1.bf16.msra.mxu0 %v74
    %89 = vmatprep.subr.bf16.mxu0 0
    %90 = vmatpush1.bf16.msra.mxu0 %v75
    %91 = vmatprep.subr.bf16.mxu0 0
    %92 = vmatpush1.bf16.msra.mxu0 %v76
    %93 = vmatprep.subr.bf16.mxu0 0
    %94 = vmatpush1.bf16.msra.mxu0 0
    %95 = vmatprep.subr.bf16.mxu0 0
    %96 = vmatpush1.bf16.msra.mxu0 0
    %97 = vmatprep.subr.bf16.mxu0 0
    %98 = vmatpush1.bf16.msra.mxu0 0
    %99 = vmatprep.subr.bf16.mxu0 0
    %100 = vmatpush1.bf16.msra.mxu0 0
    %101 = vmatprep.subr.bf16.mxu0 0
    %102 = vmatpush1.bf16.msra.mxu0 0
    %103 = vmatprep.subr.bf16.mxu0 0
    %104 = vmatpush1.bf16.msra.mxu0 0
    %105 = vmatprep.subr.bf16.mxu0 0
    %106 = vmatpush1.bf16.msra.mxu0 0
    %107 = vmatprep.subr.bf16.mxu0 0
    %108 = vmatpush1.bf16.msra.mxu0 0
    %109 = vmatprep.subr.bf16.mxu0 0
    %110 = vmatpush1.bf16.msra.mxu0 0
    %111 = vmatprep.subr.bf16.mxu0 0
    %112 = vmatpush1.bf16.msra.mxu0 0
    %113 = vmatprep.subr.bf16.mxu0 0
    %114 = vmatpush1.bf16.msra.mxu0 0
    %115 = vmatprep.subr.bf16.mxu0 0
    %116 = vmatpush1.bf16.msra.mxu0 0
    %117 = vmatprep.subr.bf16.mxu0 0
    %118 = vmatpush1.bf16.msra.mxu0 0
    %119 = vmatprep.mubr.bf16.mxu0 0
    %120 = vmatmul.mubr.bf16.gmra.mrb[0].mxu0 %v82
    %v121 = vpop.f32.mrb[0].mxu0
    %v122 = vadd.f32 0.0, %v121
    %v123 = vpop.f32.mrb[0].mxu0
    %v124 = vpop.f32.mrb[0].mxu0
    %v125 = vadd.f32 0.0, %v124
    %v126 = vpop.f32.mrb[0].mxu0
    %127 = vmatprep.mubr.bf16.mxu0 0
    %128 = vmatmul.mubr.bf16.gmra.mrb[0].mxu0 %v85
    %v129 = vpop.f32.mrb[0].mxu0
    %v130 = vadd.f32 0.0, %v129
    %v131 = vpop.f32.mrb[0].mxu0
    %v132 = vpop.f32.mrb[0].mxu0
    %v133 = vadd.f32 0.0, %v132
    %v134 = vpop.f32.mrb[0].mxu0
    %135 = vdwg.mxu0
    %v136 = vld [vmem:[%s2 + $0x1] sm:$0x1]
    %v137 = vlaneseq
    %v138 = vshrl.u32 %v137, 7
    %v139 = vsub.s32 0, %v138
    %v140 = vrot.slane %v136, %v139
    %v141 = vadd.f32 %v122, %v140
    %v142 = vadd.f32 %v125, %v140
    %v143 = vadd.f32 %v130, %v140
    %v144 = vadd.f32 %v133, %v140
    %145 = vst [vmem:[%s3] sm:$0xff] %v141
    %146 = vst [vmem:[%s3 + $0x8] sm:$0xff] %v142
    %147 = vst [vmem:[%s3 + $0x10] sm:$0xff] %v143
    %148 = vst [vmem:[%s3 + $0x18] sm:$0xff] %v144
    %v149 = vld [vmem:[%s4] sm:$0x1]
    %v150 = vadd.f32 %v122, %v125
    %v151 = vadd.f32 %v150, %v130
    %v152 = vadd.f32 %v151, %v133
    %v153 = vrot.slane %v152, 4
    %v154 = vadd.f32 %v152, %v153
    %v155 = vrot.slane %v154, 2
    %v156 = vadd.f32 %v154, %v155
    %v157 = vrot.slane %v156, 1
    %v158 = vadd.f32 %v156, %v157
    %v159 = vadd.f32 %v149, %v158
    %160 = vst [vmem:[%s4] sm:$0x1] %v159
    %v161 = vld [vmem:[%s4 + $0x1] sm:$0x1]
    %v162 = vmul.f32 %v122, %v122
    %v163 = vmul.f32 %v125, %v125
    %v164 = vmul.f32 %v130, %v130
    %v165 = vmul.f32 %v133, %v133
    %v166 = vadd.f32 %v162, %v163
    %v167 = vadd.f32 %v166, %v164
    %v168 = vadd.f32 %v167, %v165
    %v169 = vrot.slane %v168, 4
    %v170 = vadd.f32 %v168, %v169
    %v171 = vrot.slane %v170, 2
    %v172 = vadd.f32 %v170, %v171
    %v173 = vrot.slane %v172, 1
    %v174 = vadd.f32 %v172, %v173
    %v175 = vadd.f32 %v161, %v174
    %176 = vst [vmem:[%s4 + $0x1] sm:$0x1] %v175
    // Predicated region
    $region26: #{text_visual_feature_mapper.4} parent=1 // pred_check
      _
    $region27: #{text_visual_feature_mapper.4} parent=1 // pred_check_branch
      %178 = sbr.rel (0) target = $region29
    $region28: #{text_visual_feature_mapper.4} parent=1 // pred_region
      _
    $region29: #{text_visual_feature_mapper.4} parent=1 // pred_fallthru
      _
    // Predicated region
    $region30: #{text_visual_feature_mapper.4} parent=1 // pred_check
      _
    $region31: #{text_visual_feature_mapper.4} parent=1 // pred_check_branch
      %180 = sbr.rel (0) target = $region33
    $region32: #{text_visual_feature_mapper.4} parent=1 // pred_region
      _
    $region33: #{text_visual_feature_mapper.4} parent=1 // pred_fallthru
      _
    // Predicated region
    $region34: #{text_visual_feature_mapper.4} parent=1 // pred_check
      _
    $region35: #{text_visual_feature_mapper.4} parent=1 // pred_check_branch
      %182 = sbr.rel (0) target = $region37
    $region36: #{text_visual_feature_mapper.4} parent=1 // pred_region
      _
    $region37: #{text_visual_feature_mapper.4} parent=1 // pred_fallthru
      _
    // Predicated region
    $region38: #{text_visual_feature_mapper.4} parent=1 // pred_check
      _
    $region39: #{text_visual_feature_mapper.4} parent=1 // pred_check_branch
      %184 = sbr.rel (0) target = $region41
    $region40: #{text_visual_feature_mapper.4} parent=1 // pred_region
      _
    $region41: #{text_visual_feature_mapper.4} parent=1 // pred_fallthru
      _
    %185 = vsyncpa [#allocation3], 1
    %186 = vsyncpa [#allocation5], 1

// kernel: text_visual_feature_mapper.5
$region0: #{text_visual_feature_mapper.5}
  #allocation0 [shape = 'u32[]', space=smem, size = 0x4, offset = 0x4, fixed_abs, tag = 'smem constant byte address 0x4 - core index']
  #allocation1 [shape = 'u32[144,128]{1,0:T(1,128)}', space=vmem, size = 0x12000, scoped, tag = 'internal scratch']
  %s0 = inlined_call_operand.vmem [shape: f32[32,128], index: 0, kind: input, shape index: {}]
  %s1 = inlined_call_operand.vmem [shape: f32[8,128], index: 1, kind: input, shape index: {}]
  %s2 = inlined_call_operand.vmem [shape: f32[8,128], index: 2, kind: input, shape index: {}]
  %s3 = inlined_call_operand.hbm [shape: bf16[32,128], index: 3, kind: output, shape index: {}]
  %s4 = sld [smem:[#allocation0]]
  $region22: #{text_visual_feature_mapper.5} parent=0
    _
  %s6 = ssub.s32 1, %s4
  %s7 = scalar_select 0, %s6, %s4
  $region1: #{text_visual_feature_mapper.5} parent=0
    #allocation2 [shape = 'u8[8192]{0}', space=vmem, size = 0x2000, scoped, tag = 'output window, operand 0, single buffered']
    #allocation3 [shape = 's32[1]{0}', space=sflag, size = 0x4, scoped, tag = 'scoped memory for text_visual_feature_mapper.5']
    %8 = vsyncpa [#allocation3], 0
    // Predicated region
    $region2: #{text_visual_feature_mapper.5} parent=1 // pred_check
      _
    $region3: #{text_visual_feature_mapper.5} parent=1 // pred_check_branch
      %10 = sbr.rel (0) target = $region5
    $region4: #{text_visual_feature_mapper.5} parent=1 // pred_region
      _
    $region5: #{text_visual_feature_mapper.5} parent=1 // pred_fallthru
      _
    // Predicated region
    $region6: #{text_visual_feature_mapper.5} parent=1 // pred_check
      _
    $region7: #{text_visual_feature_mapper.5} parent=1 // pred_check_branch
      %12 = sbr.rel (0) target = $region9
    $region8: #{text_visual_feature_mapper.5} parent=1 // pred_region
      _
    $region9: #{text_visual_feature_mapper.5} parent=1 // pred_fallthru
      _
    // Predicated region
    $region10: #{text_visual_feature_mapper.5} parent=1 // pred_check
      _
    $region11: #{text_visual_feature_mapper.5} parent=1 // pred_check_branch
      %14 = sbr.rel (0) target = $region13
    $region12: #{text_visual_feature_mapper.5} parent=1 // pred_region
      _
    $region13: #{text_visual_feature_mapper.5} parent=1 // pred_fallthru
      _
    %v15 = vld [vmem:[%s1] sm:$0x1]
    %v16 = vmul.f32 %v15, 0.03125
    %v17 = vld [vmem:[%s1 + $0x1] sm:$0x1]
    %v18 = vmul.f32 %v17, 0.03125
    %v19 = vmul.f32 %v16, %v16
    %v20 = vsub.f32 %v18, %v19
    %v21 = vmax.f32 %v20, 0.0
    %v22 = vadd.f32 %v21, 1e-05
    %v23 = vrsqrt.pop %v22
    %v24 = vld [vmem:[%s2 + $0x2] sm:$0x1]
    %v25 = vld [vmem:[%s2 + $0x3] sm:$0x1]
    %v26 = vld [vmem:[%s2 + $0x1] sm:$0x1]
    %v27 = vmul.f32 %v24, %v23
    %v28 = vadd.f32 %v16, %v26
    %v29 = vmul.f32 %v28, %v27
    %v30 = vsub.f32 %v25, %v29
    %v31 = vld [vmem:[%s0] sm:$0xff]
    %v32 = vld [vmem:[%s0 + $0x8] sm:$0xff]
    %v33 = vld [vmem:[%s0 + $0x10] sm:$0xff]
    %v34 = vld [vmem:[%s0 + $0x18] sm:$0xff]
    %v35 = vlaneseq
    %v36 = vshrl.u32 %v35, 7
    %v37 = vsub.s32 0, %v36
    %v38 = vrot.slane %v27, %v37
    %v39 = vmul.f32 %v31, %v38
    %v40 = vmul.f32 %v32, %v38
    %v41 = vmul.f32 %v33, %v38
    %v42 = vmul.f32 %v34, %v38
    %v43 = vlaneseq
    %v44 = vshrl.u32 %v43, 7
    %v45 = vsub.s32 0, %v44
    %v46 = vrot.slane %v30, %v45
    %v47 = vadd.f32 %v39, %v46
    %v48 = vadd.f32 %v40, %v46
    %v49 = vadd.f32 %v41, %v46
    %v50 = vadd.f32 %v42, %v46
    %v51 = vmax.f32 %v47, 0.0
    %v52 = vmax.f32 %v48, 0.0
    %v53 = vmax.f32 %v49, 0.0
    %v54 = vmax.f32 %v50, 0.0
    %v55 = vpack.c.bf16 %v52, %v51
    %v56 = vpack.c.bf16 %v54, %v53
    %v59 = vunpack.c.l.b16 %v55
    %v60 = vunpack.c.h.b16 %v55
    %v61 = vunpack.c.l.b16 %v56
    %v62 = vunpack.c.h.b16 %v56
    %v63 = vpack.c.b16 %v59, %v59
    %v64 = vpack.c.b16 %v60, %v60
    %v65 = vpack.c.b16 %v61, %v61
    %v66 = vpack.c.b16 %v62, %v62
    %71 = vst [vmem:[#allocation2] sm:$0xf] %v63
    %72 = vst [vmem:[#allocation2 + $0x4] sm:$0xf] %v64
    %73 = vst [vmem:[#allocation2 + $0x8] sm:$0xf] %v65
    %74 = vst [vmem:[#allocation2 + $0xc] sm:$0xf] %v66
    // Predicated region
    $region14: #{text_visual_feature_mapper.5} parent=1 // pred_check
      _
    $region15: #{text_visual_feature_mapper.5} parent=1 // pred_check_branch
      %76 = sbr.rel (0) target = $region17
    $region16: #{text_visual_feature_mapper.5} parent=1 // pred_region
      %s78 = ssub.s32 256, 256
      %79 = vsyncadd [#allocation3], %s78
      %s80 = sshll.u32 [#allocation2], 4
      %s81 = int_to_ptr.vmem [resolvable:$true] %s80
      %86 = dma.vmem_to_hbm [thread:$0]  %s81, 256, %s3, [#allocation3], 64, 64, 4
    $region17: #{text_visual_feature_mapper.5} parent=1 // pred_fallthru
      _
    // Predicated region
    $region18: #{text_visual_feature_mapper.5} parent=1 // pred_check
      _
    $region19: #{text_visual_feature_mapper.5} parent=1 // pred_check_branch
      %88 = sbr.rel (0) target = $region21
    $region20: #{text_visual_feature_mapper.5} parent=1 // pred_region
      %89 = dma.done [#allocation3], 256
    $region21: #{text_visual_feature_mapper.5} parent=1 // pred_fallthru
      _
    %90 = vsyncpa [#allocation3], 1

// kernel: text_visual_feature_mapper.3
$region0: #{text_visual_feature_mapper.3}
  #allocation0 [shape = 'u32[]', space=smem, size = 0x4, offset = 0x4, fixed_abs, tag = 'smem constant byte address 0x4 - core index']
  #allocation1 [shape = 'u32[144,128]{1,0:T(1,128)}', space=vmem, size = 0x12000, scoped, tag = 'internal scratch']
  %s0 = inlined_call_operand.vmem [shape: f32[16,32], index: 0, kind: input, shape index: {}]
  %s1 = inlined_call_operand.vmem [shape: bf16[32,128], index: 1, kind: input, shape index: {}]
  %s2 = inlined_call_operand.vmem [shape: f32[8,128], index: 2, kind: input, shape index: {}]
  %s3 = inlined_call_operand.vmem [shape: bf16[16,128], index: 3, kind: output, shape index: {}]
  %s4 = sld [smem:[#allocation0]]
  $region22: #{text_visual_feature_mapper.3} parent=0
    _
  %s6 = ssub.s32 1, %s4
  %s7 = scalar_select 0, %s6, %s4
  // Predicated region
  $region2: #{text_visual_feature_mapper.3} parent=0 // pred_check
    _
  $region3: #{text_visual_feature_mapper.3} parent=0 // pred_check_branch
    %9 = sbr.rel (0) target = $region5
  $region4: #{text_visual_feature_mapper.3} parent=0 // pred_region
    _
  $region5: #{text_visual_feature_mapper.3} parent=0 // pred_fallthru
    _
  // Predicated region
  $region6: #{text_visual_feature_mapper.3} parent=0 // pred_check
    _
  $region7: #{text_visual_feature_mapper.3} parent=0 // pred_check_branch
    %11 = sbr.rel (0) target = $region9
  $region8: #{text_visual_feature_mapper.3} parent=0 // pred_region
    _
  $region9: #{text_visual_feature_mapper.3} parent=0 // pred_fallthru
    _
  // Predicated region
  $region10: #{text_visual_feature_mapper.3} parent=0 // pred_check
    _
  $region11: #{text_visual_feature_mapper.3} parent=0 // pred_check_branch
    %13 = sbr.rel (0) target = $region13
  $region12: #{text_visual_feature_mapper.3} parent=0 // pred_region
    _
  $region13: #{text_visual_feature_mapper.3} parent=0 // pred_fallthru
    _
  %v15 = vld [vmem:[%s0] sm:$0xff]
  %v16 = vld [vmem:[%s0 + $0x8] sm:$0xff]
  %v17 = vpack.c.bf16 %v16, %v15
  %v18 = vld [vmem:[%s1] sm:$0xf]
  %v19 = vld [vmem:[%s1 + $0x4] sm:$0xf]
  %v20 = vld [vmem:[%s1 + $0x8] sm:$0xf]
  %v21 = vld [vmem:[%s1 + $0xc] sm:$0xf]
  %v22 = vld [vmem:[%s2] sm:$0x1]
  %v23 = vlaneseq
  %v24 = vshrl.u32 %v23, 7
  %v25 = vsub.s32 0, %v24
  %v26 = vrot.slane %v22, %v25
  %v31 = vunpack.c.l.b16 %v18
  %v32 = vunpack.c.l.b16 %v19
  %v33 = vunpack.c.l.b16 %v20
  %v34 = vunpack.c.l.b16 %v21
  %v35 = vpack.c.b16 %v32, %v31
  %v36 = vpack.c.b16 %v34, %v33
  %vm39 = vcmask 261120
  %v41 = vsel %vm39, %v17, 0
  %43 = vmatprep.subr.bf16.mxu0 0
  %44 = vmatpush1.bf16.msra.mxu0 %v35
  %45 = vmatprep.subr.bf16.mxu0 0
  %46 = vmatpush1.bf16.msra.mxu0 %v36
  %47 = vmatprep.subr.bf16.mxu0 0
  %48 = vmatpush1.bf16.msra.mxu0 0
  %49 = vmatprep.subr.bf16.mxu0 0
  %50 = vmatpush1.bf16.msra.mxu0 0
  %51 = vmatprep.subr.bf16.mxu0 0
  %52 = vmatpush1.bf16.msra.mxu0 0
  %53 = vmatprep.subr.bf16.mxu0 0
  %54 = vmatpush1.bf16.msra.mxu0 0
  %55 = vmatprep.subr.bf16.mxu0 0
  %56 = vmatpush1.bf16.msra.mxu0 0
  %57 = vmatprep.subr.bf16.mxu0 0
  %58 = vmatpush1.bf16.msra.mxu0 0
  %59 = vmatprep.subr.bf16.mxu0 0
  %60 = vmatpush1.bf16.msra.mxu0 0
  %61 = vmatprep.subr.bf16.mxu0 0
  %62 = vmatpush1.bf16.msra.mxu0 0
  %63 = vmatprep.subr.bf16.mxu0 0
  %64 = vmatpush1.bf16.msra.mxu0 0
  %65 = vmatprep.subr.bf16.mxu0 0
  %66 = vmatpush1.bf16.msra.mxu0 0
  %67 = vmatprep.subr.bf16.mxu0 0
  %68 = vmatpush1.bf16.msra.mxu0 0
  %69 = vmatprep.subr.bf16.mxu0 0
  %70 = vmatpush1.bf16.msra.mxu0 0
  %71 = vmatprep.subr.bf16.mxu0 0
  %72 = vmatpush1.bf16.msra.mxu0 0
  %73 = vmatprep.subr.bf16.mxu0 0
  %74 = vmatpush1.bf16.msra.mxu0 0
  %75 = vmatprep.mubr.bf16.mxu0 0
  %76 = vmatmul.mubr.bf16.gmra.mrb[0].mxu0 %v41
  %v77 = vpop.f32.mrb[0].mxu0
  %v78 = vadd.f32 %v26, %v77
  %v79 = vpop.f32.mrb[0].mxu0
  %v80 = vpop.f32.mrb[0].mxu0
  %v81 = vadd.f32 %v26, %v80
  %v82 = vpop.f32.mrb[0].mxu0
  %83 = vdwg.mxu0
  %v84 = vpack.c.bf16 %v81, %v78
  %v86 = vunpack.c.l.b16 %v84
  %v87 = vunpack.c.h.b16 %v84
  %v88 = vpack.c.b16 %v86, %v86
  %v89 = vpack.c.b16 %v87, %v87
  %92 = vst [vmem:[%s3] sm:$0xf] %v88
  %93 = vst [vmem:[%s3 + $0x4] sm:$0xf] %v89
  // Predicated region
  $region14: #{text_visual_feature_mapper.3} parent=0 // pred_check
    _
  $region15: #{text_visual_feature_mapper.3} parent=0 // pred_check_branch
    %95 = sbr.rel (0) target = $region17
  $region16: #{text_visual_feature_mapper.3} parent=0 // pred_region
    _
  $region17: #{text_visual_feature_mapper.3} parent=0 // pred_fallthru
    _
  // Predicated region
  $region18: #{text_visual_feature_mapper.3} parent=0 // pred_check
    _
  $region19: #{text_visual_feature_mapper.3} parent=0 // pred_check_branch
    %97 = sbr.rel (0) target = $region21
  $region20: #{text_visual_feature_mapper.3} parent=0 // pred_region
    _
  $region21: #{text_visual_feature_mapper.3} parent=0 // pred_fallthru
    _

</llo_original>
